<compile_context>
chip_gen: v7x
topology: tpu7x:2x2x1
jax: 0.10.0
libtpu: 0.0.40
codegen_flags: <defaults>
</compile_context>

<pallas_src>
import jax
import jax.numpy as jnp
from jax.experimental import pallas as pl
from jax.experimental.pallas import tpu as pltpu


LANE = 128
PAIR = 2 * LANE          # 256: one row = 128 batch elements x 2 interleaved features
SELU_ALPHA = 1.6732632423543772
SELU_SCALE = 1.0507009873554805


def _selu(h):
    # PyTorch SELU: scale * (max(0, x) + min(0, alpha * (exp(x) - 1)))
    # exp() argument clamped to <= 0 so no inf intermediates are produced.
    neg = SELU_ALPHA * (jnp.exp(jnp.minimum(h, 0.0)) - 1.0)
    return SELU_SCALE * (jnp.maximum(h, 0.0) + jnp.minimum(neg, 0.0))


def _rotation_spinal_kernel(c_ref, x_ref, o_ref):
    """c_ref: VMEM f32[8, 256] lane-coefficient table
         rows 0..3: fused Linear1+Linear2 -> (same-lane w, +1-partner w, -1-partner w, bias)
         rows 4..7: Linear3, same order.
       x_ref / o_ref: VMEM [TR, 256]; even lanes hold feature 0, odd lanes hold
       feature 1 of the same batch element (zero-copy view of the [B, 2] input)."""
    x = x_ref[...].astype(jnp.float32)

    def affine(v, base):
        wa = c_ref[base + 0:base + 1, :]       # (1, 256) -> broadcasts over rows
        we = c_ref[base + 1:base + 2, :]       # nonzero only on even lanes
        wo = c_ref[base + 2:base + 3, :]       # nonzero only on odd lanes
        bv = c_ref[base + 3:base + 4, :]
        # Partner values: lane j+1 (for even lanes) / lane j-1 (for odd lanes).
        # Wrap-around contributions are multiplied by zero coefficients.
        nxt = pltpu.roll(v, PAIR - 1, axis=1)  # result[i] = v[(i + 1) % 256]
        prv = pltpu.roll(v, 1, axis=1)         # result[i] = v[(i - 1) % 256]
        return wa * v + we * nxt + wo * prv + bv

    # Fused Linear1+Linear2, Dropout (eval mode -> identity), Tanh (EUP).
    h = jnp.tanh(affine(x, 0))
    # Linear3 -> SELU -> Sigmoid (via tanh identity: sigmoid(x) = 0.5*(tanh(x/2)+1)).
    g = _selu(affine(h, 4))
    o_ref[...] = (0.5 * (jnp.tanh(0.5 * g) + 1.0)).astype(o_ref.dtype)


def _lane_coeffs(w, b, even):
    """Per-lane coefficient vectors for a 2x2 Linear applied on the interleaved layout.
    PyTorch layout: y0 = w00*x0 + w01*x1 + b0 ; y1 = w10*x0 + w11*x1 + b1."""
    return [
        jnp.where(even, w[0, 0], w[1, 1]),   # multiplies the same-lane value
        jnp.where(even, w[0, 1], 0.0),       # multiplies the lane+1 partner (even lanes only)
        jnp.where(even, 0.0, w[1, 0]),       # multiplies the lane-1 partner (odd lanes only)
        jnp.where(even, b[0], b[1]),         # bias
    ]


def rotation_spinal_cord_forward(x, params, *, block_rows=2048):
    """x: [B, 2]; params: dict of w1,b1,w2,b2,w3,b3 (PyTorch [out,in] layout).
    Returns [B, 2] in x.dtype."""
    B, F = x.shape
    assert F == 2

    w1 = params["w1"].astype(jnp.float32)
    b1 = params["b1"].astype(jnp.float32)
    w2 = params["w2"].astype(jnp.float32)
    b2 = params["b2"].astype(jnp.float32)
    w3 = params["w3"].astype(jnp.float32)
    b3 = params["b3"].astype(jnp.float32)

    # Fuse the two back-to-back Linears (Dropout is identity in eval mode,
    # no nonlinearity in between):
    #   (x @ W1^T + b1) @ W2^T + b2 = x @ (W2 @ W1)^T + (W2 @ b1 + b2)
    w12 = w2 @ w1
    b12 = w2 @ b1 + b2

    # Per-lane coefficient table for the interleaved [., 256] layout (8 x 256 f32, 8 KiB).
    even = (jnp.arange(PAIR) % 2) == 0
    coef = jnp.stack(
        _lane_coeffs(w12, b12, even) + _lane_coeffs(w3, b3, even), axis=0
    ).astype(jnp.float32)

    # Tiling over lane-dense rows of 128 batch elements each.
    rows = pl.cdiv(B, LANE)
    if rows <= block_rows:
        block_rows = rows                            # single block (full-dim exemption)
    else:
        block_rows = max(8, (block_rows // 8) * 8)   # keep (8, 128) divisibility
    rows_padded = pl.cdiv(rows, block_rows) * block_rows
    b_padded = rows_padded * LANE

    xp = x
    if b_padded != B:
        xp = jnp.pad(xp, ((0, b_padded - B), (0, 0)))
    # Zero-copy contiguous reshape: [b_padded, 2] -> [rows_padded, 256]
    # (batch across lanes, features interleaved on even/odd lanes).
    xi = xp.reshape(rows_padded, PAIR)

    n_elem = rows_padded * PAIR
    itemsize = jnp.dtype(x.dtype).itemsize
    cost = pl.CostEstimate(
        flops=int(20 * n_elem),
        transcendentals=int(3 * n_elem),
        bytes_accessed=int(2 * itemsize * n_elem),
    )

    grid = (rows_padded // block_rows,)
    out = pl.pallas_call(
        _rotation_spinal_kernel,
        out_shape=jax.ShapeDtypeStruct((rows_padded, PAIR), x.dtype),
        grid=grid,
        in_specs=[
            # Constant index map -> coefficient table is DMA'd once and revisited.
            pl.BlockSpec((8, PAIR), lambda i: (0, 0)),
            pl.BlockSpec((block_rows, PAIR), lambda i: (i, 0)),
        ],
        out_specs=pl.BlockSpec((block_rows, PAIR), lambda i: (i, 0)),
        compiler_params=pltpu.CompilerParams(
            # "parallel" enables megacore sharding of the batch grid on v7x.
            dimension_semantics=("parallel",)),
        cost_estimate=cost,
    )(coef, xi)

    # Zero-copy reshape back to [b_padded, 2]; drop padding rows.
    return out.reshape(b_padded, 2)[:B]


def init_params(key):
    """Deterministic init mimicking nn.Linear default (uniform in +/- 1/sqrt(fan_in))."""
    ks = jax.random.split(key, 6)
    bound = 1.0 / jnp.sqrt(2.0)
    u = lambda k, shape: jax.random.uniform(k, shape, jnp.float32, -bound, bound)
    return {
        "w1": u(ks[0], (2, 2)), "b1": u(ks[1], (2,)),
        "w2": u(ks[2], (2, 2)), "b2": u(ks[3], (2,)),
        "w3": u(ks[4], (2, 2)), "b3": u(ks[5], (2,)),
    }


def reference_forward(x, p):
    """Pure-JAX reference (un-fused, standard jax.nn ops) for correctness check."""
    h = x @ p["w1"].T + p["b1"]
    h = h @ p["w2"].T + p["b2"]
    h = jnp.tanh(h)                                  # dropout(eval) = identity
    h = h @ p["w3"].T + p["b3"]
    h = jax.nn.selu(h)
    return jax.nn.sigmoid(h)


if __name__ == "__main__":
    key = jax.random.PRNGKey(0)
    kx, kp = jax.random.split(key)
    params = init_params(kp)

    # Small, non-128-aligned batch: exercises the pad path (single block, grid = 1).
    B = 300
    x = jax.random.normal(kx, (B, 2), dtype=jnp.float32)
    out = jax.block_until_ready(rotation_spinal_cord_forward(x, params))
    ref = reference_forward(x, params)
    assert out.shape == (B, 2)
    assert jnp.allclose(out, ref, atol=1e-5, rtol=1e-5), (out, ref)

    # Larger, unaligned batch with a multi-step grid (rows=40, grid=5) to exercise tiling.
    B2 = 5000
    x2 = jax.random.normal(jax.random.fold_in(kx, 1), (B2, 2), dtype=jnp.float32)
    out2 = jax.block_until_ready(
        rotation_spinal_cord_forward(x2, params, block_rows=8))
    ref2 = reference_forward(x2, params)
    assert out2.shape == (B2, 2)
    assert jnp.allclose(out2, ref2, atol=1e-5, rtol=1e-5)

    print("KERNEL_OK")
</pallas_src>

<mosaic_0001>
module attributes {stable_mosaic.version = 11 : i64} {
  func.func @_rotation_spinal_kernel(%arg0: i32, %arg1: memref<8x256xf32, #tpu.memory_space<vmem>>, %arg2: memref<3x256xf32, #tpu.memory_space<vmem>>, %arg3: memref<3x256xf32, #tpu.memory_space<vmem>>) attributes {dimension_semantics = [#tpu.dimension_semantics<parallel>], iteration_bounds = array<i64: 1>, scalar_prefetch = 0 : i64, scratch_operands = 0 : i64, tpu.core_type = #tpu.core_type<tc>, window_params = [{pipeline_mode = #tpu.pipeline_mode<synchronous>, transform_indices = @transform_0, window_bounds = array<i64: 8, 256>}, {transform_indices = @transform_1, window_bounds = array<i64: 3, 256>}, {transform_indices = @transform_2, window_bounds = array<i64: 3, 256>}]} {
    %c0 = arith.constant 0 : index
    %c0_0 = arith.constant 0 : index
    %0 = vector.load %arg2[%c0, %c0_0] : memref<3x256xf32, #tpu.memory_space<vmem>>, vector<3x256xf32>
    %c0_1 = arith.constant 0 : index
    %c0_2 = arith.constant 0 : index
    %1 = vector.load %arg1[%c0_1, %c0_2] : memref<8x256xf32, #tpu.memory_space<vmem>>, vector<1x256xf32>
    %c1 = arith.constant 1 : index
    %c0_3 = arith.constant 0 : index
    %2 = vector.load %arg1[%c1, %c0_3] : memref<8x256xf32, #tpu.memory_space<vmem>>, vector<1x256xf32>
    %c2 = arith.constant 2 : index
    %c0_4 = arith.constant 0 : index
    %3 = vector.load %arg1[%c2, %c0_4] : memref<8x256xf32, #tpu.memory_space<vmem>>, vector<1x256xf32>
    %c3 = arith.constant 3 : index
    %c0_5 = arith.constant 0 : index
    %4 = vector.load %arg1[%c3, %c0_5] : memref<8x256xf32, #tpu.memory_space<vmem>>, vector<1x256xf32>
    %c255_i32 = arith.constant 255 : i32
    %5 = tpu.dynamic_rotate %0 by %c255_i32 dim 1 : vector<3x256xf32>, i32 -> vector<3x256xf32>
    %c1_i32 = arith.constant 1 : i32
    %6 = tpu.dynamic_rotate %0 by %c1_i32 dim 1 : vector<3x256xf32>, i32 -> vector<3x256xf32>
    %7 = vector.broadcast %1 : vector<1x256xf32> to vector<3x256xf32>
    %8 = arith.mulf %7, %0 : vector<3x256xf32>
    %9 = vector.broadcast %2 : vector<1x256xf32> to vector<3x256xf32>
    %10 = arith.mulf %9, %5 : vector<3x256xf32>
    %11 = arith.addf %8, %10 : vector<3x256xf32>
    %12 = vector.broadcast %3 : vector<1x256xf32> to vector<3x256xf32>
    %13 = arith.mulf %12, %6 : vector<3x256xf32>
    %14 = arith.addf %11, %13 : vector<3x256xf32>
    %15 = vector.broadcast %4 : vector<1x256xf32> to vector<3x256xf32>
    %16 = arith.addf %14, %15 : vector<3x256xf32>
    %17 = math.tanh %16 : vector<3x256xf32>
    %c4 = arith.constant 4 : index
    %c0_6 = arith.constant 0 : index
    %18 = vector.load %arg1[%c4, %c0_6] : memref<8x256xf32, #tpu.memory_space<vmem>>, vector<1x256xf32>
    %c5 = arith.constant 5 : index
    %c0_7 = arith.constant 0 : index
    %19 = vector.load %arg1[%c5, %c0_7] : memref<8x256xf32, #tpu.memory_space<vmem>>, vector<1x256xf32>
    %c6 = arith.constant 6 : index
    %c0_8 = arith.constant 0 : index
    %20 = vector.load %arg1[%c6, %c0_8] : memref<8x256xf32, #tpu.memory_space<vmem>>, vector<1x256xf32>
    %c7 = arith.constant 7 : index
    %c0_9 = arith.constant 0 : index
    %21 = vector.load %arg1[%c7, %c0_9] : memref<8x256xf32, #tpu.memory_space<vmem>>, vector<1x256xf32>
    %c255_i32_10 = arith.constant 255 : i32
    %22 = tpu.dynamic_rotate %17 by %c255_i32_10 dim 1 : vector<3x256xf32>, i32 -> vector<3x256xf32>
    %c1_i32_11 = arith.constant 1 : i32
    %23 = tpu.dynamic_rotate %17 by %c1_i32_11 dim 1 : vector<3x256xf32>, i32 -> vector<3x256xf32>
    %24 = vector.broadcast %18 : vector<1x256xf32> to vector<3x256xf32>
    %25 = arith.mulf %24, %17 : vector<3x256xf32>
    %26 = vector.broadcast %19 : vector<1x256xf32> to vector<3x256xf32>
    %27 = arith.mulf %26, %22 : vector<3x256xf32>
    %28 = arith.addf %25, %27 : vector<3x256xf32>
    %29 = vector.broadcast %20 : vector<1x256xf32> to vector<3x256xf32>
    %30 = arith.mulf %29, %23 : vector<3x256xf32>
    %31 = arith.addf %28, %30 : vector<3x256xf32>
    %32 = vector.broadcast %21 : vector<1x256xf32> to vector<3x256xf32>
    %33 = arith.addf %31, %32 : vector<3x256xf32>
    %cst = arith.constant 0.000000e+00 : f32
    %34 = vector.broadcast %cst : f32 to vector<3x256xf32>
    %35 = arith.minimumf %33, %34 : vector<3x256xf32>
    %36 = math.exp %35 : vector<3x256xf32>
    %cst_12 = arith.constant 1.000000e+00 : f32
    %37 = vector.broadcast %cst_12 : f32 to vector<3x256xf32>
    %38 = arith.subf %36, %37 : vector<3x256xf32>
    %cst_13 = arith.constant 1.67326319 : f32
    %39 = vector.broadcast %cst_13 : f32 to vector<3x256xf32>
    %40 = arith.mulf %39, %38 : vector<3x256xf32>
    %cst_14 = arith.constant 0.000000e+00 : f32
    %41 = vector.broadcast %cst_14 : f32 to vector<3x256xf32>
    %42 = arith.maximumf %33, %41 : vector<3x256xf32>
    %cst_15 = arith.constant 0.000000e+00 : f32
    %43 = vector.broadcast %cst_15 : f32 to vector<3x256xf32>
    %44 = arith.minimumf %40, %43 : vector<3x256xf32>
    %45 = arith.addf %42, %44 : vector<3x256xf32>
    %cst_16 = arith.constant 1.05070102 : f32
    %46 = vector.broadcast %cst_16 : f32 to vector<3x256xf32>
    %47 = arith.mulf %46, %45 : vector<3x256xf32>
    %cst_17 = arith.constant 5.000000e-01 : f32
    %48 = vector.broadcast %cst_17 : f32 to vector<3x256xf32>
    %49 = arith.mulf %48, %47 : vector<3x256xf32>
    %50 = math.tanh %49 : vector<3x256xf32>
    %cst_18 = arith.constant 1.000000e+00 : f32
    %51 = vector.broadcast %cst_18 : f32 to vector<3x256xf32>
    %52 = arith.addf %50, %51 : vector<3x256xf32>
    %cst_19 = arith.constant 5.000000e-01 : f32
    %53 = vector.broadcast %cst_19 : f32 to vector<3x256xf32>
    %54 = arith.mulf %53, %52 : vector<3x256xf32>
    %c0_20 = arith.constant 0 : index
    %c0_21 = arith.constant 0 : index
    %55 = vector.load %arg3[%c0_20, %c0_21] : memref<3x256xf32, #tpu.memory_space<vmem>>, vector<3x256xf32>
    tpu.vector_store %arg3[%c0_20, %c0_21], %54 {strides = array<i32>} : memref<3x256xf32, #tpu.memory_space<vmem>>, vector<3x256xf32>,
    return
  }
  func.func @transform_0(%arg0: i32) -> (i32, i32) {
    %c0_i32 = arith.constant 0 : i32
    %c0_i32_0 = arith.constant 0 : i32
    %c0_i32_1 = arith.constant 0 : i32
    return %c0_i32, %c0_i32_0 : i32, i32
  }
  func.func @transform_1(%arg0: i32) -> (i32, i32) {
    %c0_i32 = arith.constant 0 : i32
    %c0_i32_0 = arith.constant 0 : i32
    return %arg0, %c0_i32 : i32, i32
  }
  func.func @transform_2(%arg0: i32) -> (i32, i32) {
    %c0_i32 = arith.constant 0 : i32
    %c0_i32_0 = arith.constant 0 : i32
    return %arg0, %c0_i32 : i32, i32
  }
}

</mosaic_0001>

<llo_original>
// kernel: tpu_custom_call.1
$region0: #{tpu_custom_call.1}
  #allocation0 [shape = 'u32[]', space=smem, size = 0x4, offset = 0x4, fixed_abs, tag = 'smem constant byte address 0x4 - core index']
  #allocation1 [shape = 'u32[144,128]{1,0:T(1,128)}', space=vmem, size = 0x12000, scoped, tag = 'internal scratch']
  %s0 = inlined_call_operand.hbm [shape: f32[8,256], index: 0, kind: input, shape index: {}]
  %s1 = inlined_call_operand.hbm [shape: f32[3,256], index: 1, kind: input, shape index: {}]
  %s2 = inlined_call_operand.hbm [shape: f32[3,256], index: 2, kind: output, shape index: {}]
  %s3 = sld [smem:[#allocation0]]
  $region26: #{tpu_custom_call.1} parent=0
    _
  %s5 = ssub.s32 1, %s3
  %s6 = scalar_select 0, %s5, %s3
  $region1: #{tpu_custom_call.1} parent=0
    #allocation2 [shape = 'u8[8192]{0}', space=vmem, size = 0x2000, scoped, tag = 'input window, operand 0, single buffered']
    #allocation3 [shape = 's32[1]{0}', space=sflag, size = 0x4, scoped, tag = 'scoped memory for tpu_custom_call.1']
    #allocation4 [shape = 's32[1]{0}', space=sflag, size = 0x4, scoped, tag = 'scoped memory for tpu_custom_call.1']
    #allocation5 [shape = 'u8[4096]{0}', space=vmem, size = 0x1000, scoped, tag = 'input window, operand 1, single buffered']
    #allocation6 [shape = 's32[1]{0}', space=sflag, size = 0x4, scoped, tag = 'scoped memory for tpu_custom_call.1']
    #allocation7 [shape = 'u8[4096]{0}', space=vmem, size = 0x1000, scoped, tag = 'output window, operand 0, single buffered']
    %7 = vsyncpa [#allocation3], 0
    %8 = vsyncpa [#allocation6], 0
    %9 = vsyncpa [#allocation4], 0
    // Predicated region
    $region2: #{tpu_custom_call.1} parent=1 // pred_check
      _
    $region3: #{tpu_custom_call.1} parent=1 // pred_check_branch
      %11 = sbr.rel (0) target = $region5
    $region4: #{tpu_custom_call.1} parent=1 // pred_region
      %s13 = ssub.s32 256, 256
      %14 = vsyncadd [#allocation3], %s13
      %s16 = sshll.u32 [#allocation2], 4
      %s17 = int_to_ptr.vmem [resolvable:$true] %s16
      %19 = dma.hbm_to_vmem [thread:$0]  %s0, 256, %s17, [#allocation3]
    $region5: #{tpu_custom_call.1} parent=1 // pred_fallthru
      _
    // Predicated region
    $region6: #{tpu_custom_call.1} parent=1 // pred_check
      _
    $region7: #{tpu_custom_call.1} parent=1 // pred_check_branch
      %21 = sbr.rel (0) target = $region9
    $region8: #{tpu_custom_call.1} parent=1 // pred_region
      %s23 = ssub.s32 128, 128
      %24 = vsyncadd [#allocation6], %s23
      %s26 = sshll.u32 [#allocation5], 4
      %s27 = int_to_ptr.vmem [resolvable:$true] %s26
      %29 = dma.hbm_to_vmem [thread:$0]  %s1, 128, %s27, [#allocation6]
    $region9: #{tpu_custom_call.1} parent=1 // pred_fallthru
      _
    // Predicated region
    $region10: #{tpu_custom_call.1} parent=1 // pred_check
      _
    $region11: #{tpu_custom_call.1} parent=1 // pred_check_branch
      %31 = sbr.rel (0) target = $region13
    $region12: #{tpu_custom_call.1} parent=1 // pred_region
      %32 = dma.done [#allocation3], 256
    $region13: #{tpu_custom_call.1} parent=1 // pred_fallthru
      _
    // Predicated region
    $region14: #{tpu_custom_call.1} parent=1 // pred_check
      _
    $region15: #{tpu_custom_call.1} parent=1 // pred_check_branch
      %34 = sbr.rel (0) target = $region17
    $region16: #{tpu_custom_call.1} parent=1 // pred_region
      %35 = dma.done [#allocation6], 128
    $region17: #{tpu_custom_call.1} parent=1 // pred_fallthru
      _
    %v36 = vld [vmem:[#allocation5] sm:$0x77]
    %v37 = vld [vmem:[#allocation2] ss:$8 sm:$0x3]
    %s38 = scalar_lea.vmem [#allocation2], 1
    %v39 = vld [vmem:[%s38] ss:$8 sm:$0x3]
    %s40 = scalar_lea.vmem [#allocation2], 2
    %v41 = vld [vmem:[%s40] ss:$8 sm:$0x3]
    %s42 = scalar_lea.vmem [#allocation2], 3
    %v43 = vld [vmem:[%s42] ss:$8 sm:$0x3]
    %v45 = vcombine.high %v36, %v36
    %47 = vrot.lane.b32.xlu0 %v36, 127
    %v48 = vpop.permute.xlu0 %47
    %49 = vrot.lane.b32.xlu0 %v45, 127
    %v50 = vpop.permute.xlu0 %49
    %v51 = vlaneseq
    %v52 = vand.u32 %v51, 127
    %vm53 = vcmp.lt.s32.totalorder %v52, 127
    %v54 = vsel %vm53, %v48, %v50
    %v55 = vsel %vm53, %v50, %v48
    %56 = vrot.lane.b32.xlu0 %v36, 1
    %v57 = vpop.permute.xlu0 %56
    %58 = vrot.lane.b32.xlu0 %v45, 1
    %v59 = vpop.permute.xlu0 %58
    %vm60 = vcmp.lt.s32.totalorder %v52, 1
    %v61 = vsel %vm60, %v57, %v59
    %v62 = vsel %vm60, %v59, %v57
    %v64 = vlaneseq
    %v65 = vshrl.u32 %v64, 7
    %v66 = vsub.s32 0, %v65
    %v67 = vrot.slane %v37, %v66
    %v68 = vlaneseq
    %v69 = vshrl.u32 %v68, 7
    %v70 = vsub.s32 1, %v69
    %v71 = vrot.slane %v37, %v70
    %v74 = vmul.f32 %v67, %v36
    %v75 = vmul.f32 %v71, %v45
    %v77 = vlaneseq
    %v78 = vshrl.u32 %v77, 7
    %v79 = vsub.s32 0, %v78
    %v80 = vrot.slane %v39, %v79
    %v81 = vlaneseq
    %v82 = vshrl.u32 %v81, 7
    %v83 = vsub.s32 1, %v82
    %v84 = vrot.slane %v39, %v83
    %v87 = vmul.f32 %v80, %v54
    %v88 = vmul.f32 %v84, %v55
    %v89 = vadd.f32 %v74, %v87
    %v90 = vadd.f32 %v75, %v88
    %v92 = vlaneseq
    %v93 = vshrl.u32 %v92, 7
    %v94 = vsub.s32 0, %v93
    %v95 = vrot.slane %v41, %v94
    %v96 = vlaneseq
    %v97 = vshrl.u32 %v96, 7
    %v98 = vsub.s32 1, %v97
    %v99 = vrot.slane %v41, %v98
    %v102 = vmul.f32 %v95, %v62
    %v103 = vmul.f32 %v99, %v61
    %v104 = vadd.f32 %v89, %v102
    %v105 = vadd.f32 %v90, %v103
    %v107 = vlaneseq
    %v108 = vshrl.u32 %v107, 7
    %v109 = vsub.s32 0, %v108
    %v110 = vrot.slane %v43, %v109
    %v111 = vlaneseq
    %v112 = vshrl.u32 %v111, 7
    %v113 = vsub.s32 1, %v112
    %v114 = vrot.slane %v43, %v113
    %v117 = vadd.f32 %v104, %v110
    %v118 = vadd.f32 %v105, %v114
    %v119 = vtanh.pop %v117
    %v120 = vtanh.pop %v118
    %s121 = scalar_lea.vmem [#allocation2], 4
    %v122 = vld [vmem:[%s121] ss:$8 sm:$0x3]
    %s123 = scalar_lea.vmem [#allocation2], 5
    %v124 = vld [vmem:[%s123] ss:$8 sm:$0x3]
    %s125 = scalar_lea.vmem [#allocation2], 6
    %v126 = vld [vmem:[%s125] ss:$8 sm:$0x3]
    %s127 = scalar_lea.vmem [#allocation2], 7
    %v128 = vld [vmem:[%s127] ss:$8 sm:$0x3]
    %129 = vrot.lane.b32.xlu0 %v119, 127
    %v130 = vpop.permute.xlu0 %129
    %131 = vrot.lane.b32.xlu0 %v120, 127
    %v132 = vpop.permute.xlu0 %131
    %v133 = vsel %vm53, %v130, %v132
    %v134 = vsel %vm53, %v132, %v130
    %135 = vrot.lane.b32.xlu0 %v119, 1
    %v136 = vpop.permute.xlu0 %135
    %137 = vrot.lane.b32.xlu0 %v120, 1
    %v138 = vpop.permute.xlu0 %137
    %v139 = vsel %vm60, %v136, %v138
    %v140 = vsel %vm60, %v138, %v136
    %v142 = vlaneseq
    %v143 = vshrl.u32 %v142, 7
    %v144 = vsub.s32 0, %v143
    %v145 = vrot.slane %v122, %v144
    %v146 = vlaneseq
    %v147 = vshrl.u32 %v146, 7
    %v148 = vsub.s32 1, %v147
    %v149 = vrot.slane %v122, %v148
    %v152 = vmul.f32 %v145, %v119
    %v153 = vmul.f32 %v149, %v120
    %v155 = vlaneseq
    %v156 = vshrl.u32 %v155, 7
    %v157 = vsub.s32 0, %v156
    %v158 = vrot.slane %v124, %v157
    %v159 = vlaneseq
    %v160 = vshrl.u32 %v159, 7
    %v161 = vsub.s32 1, %v160
    %v162 = vrot.slane %v124, %v161
    %v165 = vmul.f32 %v158, %v133
    %v166 = vmul.f32 %v162, %v134
    %v167 = vadd.f32 %v152, %v165
    %v168 = vadd.f32 %v153, %v166
    %v170 = vlaneseq
    %v171 = vshrl.u32 %v170, 7
    %v172 = vsub.s32 0, %v171
    %v173 = vrot.slane %v126, %v172
    %v174 = vlaneseq
    %v175 = vshrl.u32 %v174, 7
    %v176 = vsub.s32 1, %v175
    %v177 = vrot.slane %v126, %v176
    %v180 = vmul.f32 %v173, %v140
    %v181 = vmul.f32 %v177, %v139
    %v182 = vadd.f32 %v167, %v180
    %v183 = vadd.f32 %v168, %v181
    %v185 = vlaneseq
    %v186 = vshrl.u32 %v185, 7
    %v187 = vsub.s32 0, %v186
    %v188 = vrot.slane %v128, %v187
    %v189 = vlaneseq
    %v190 = vshrl.u32 %v189, 7
    %v191 = vsub.s32 1, %v190
    %v192 = vrot.slane %v128, %v191
    %v195 = vadd.f32 %v182, %v188
    %v196 = vadd.f32 %v183, %v192
    %v197 = vmin.f32 %v195, 0.0
    %v198 = vmin.f32 %v196, 0.0
    %v199 = vmul.f32 %v197, 1.442695
    %v200 = vpow.pop %v199
    %v201 = vmul.f32 %v198, 1.442695
    %v202 = vpow.pop %v201
    %v203 = vsub.f32 %v200, 1.0
    %v204 = vsub.f32 %v202, 1.0
    %v205 = vmul.f32 %v203, 1.6732632
    %v206 = vmul.f32 %v204, 1.6732632
    %v207 = vmax.f32 %v195, 0.0
    %v208 = vmax.f32 %v196, 0.0
    %v209 = vmin.f32 %v205, 0.0
    %v210 = vmin.f32 %v206, 0.0
    %v211 = vadd.f32 %v207, %v209
    %v212 = vadd.f32 %v208, %v210
    %v213 = vmul.f32 %v211, 1.050701
    %v214 = vmul.f32 %v212, 1.050701
    %v215 = vmul.f32 %v213, 0.5
    %v216 = vmul.f32 %v214, 0.5
    %v217 = vtanh.pop %v215
    %v218 = vtanh.pop %v216
    %v219 = vadd.f32 %v217, 1.0
    %v220 = vadd.f32 %v218, 1.0
    %v221 = vmul.f32 %v219, 0.5
    %v222 = vmul.f32 %v220, 0.5
    %v225 = vcombine.low %v221, %v222
    %227 = vst [vmem:[#allocation7] sm:$0x77] %v225
    // Predicated region
    $region18: #{tpu_custom_call.1} parent=1 // pred_check
      _
    $region19: #{tpu_custom_call.1} parent=1 // pred_check_branch
      %229 = sbr.rel (0) target = $region21
    $region20: #{tpu_custom_call.1} parent=1 // pred_region
      %s231 = ssub.s32 128, 128
      %232 = vsyncadd [#allocation4], %s231
      %s234 = sshll.u32 [#allocation7], 4
      %s235 = int_to_ptr.vmem [resolvable:$true] %s234
      %237 = dma.vmem_to_hbm [thread:$0]  %s235, 128, %s2, [#allocation4]
    $region21: #{tpu_custom_call.1} parent=1 // pred_fallthru
      _
    // Predicated region
    $region22: #{tpu_custom_call.1} parent=1 // pred_check
      _
    $region23: #{tpu_custom_call.1} parent=1 // pred_check_branch
      %239 = sbr.rel (0) target = $region25
    $region24: #{tpu_custom_call.1} parent=1 // pred_region
      %240 = dma.done [#allocation4], 128
    $region25: #{tpu_custom_call.1} parent=1 // pred_fallthru
      _
    %241 = vsyncpa [#allocation3], 1
    %242 = vsyncpa [#allocation6], 1
    %243 = vsyncpa [#allocation4], 1

</llo_original>
